<compile_context>
chip_gen: v6e
topology: v6e:2x2x1
jax: 0.10.0
libtpu: 0.0.40
codegen_flags: <defaults>
</compile_context>

<pallas_src>
import functools

import jax
import jax.numpy as jnp
from jax.experimental import pallas as pl
from jax.experimental.pallas import tpu as pltpu


_PARALLEL_1D = pltpu.CompilerParams(dimension_semantics=("parallel",))
_PARALLEL_2D = pltpu.CompilerParams(dimension_semantics=("parallel", "parallel"))


def _row_tile(m, target=512):
    """Row-tile size: full extent for small m, else `target` (a multiple of 8)."""
    if m <= target:
        return m
    return target


# --------------------------------------------------------------------------------------
# Pallas kernels
# --------------------------------------------------------------------------------------

def _linear_kernel(x_ref, w_ref, b_ref, o_ref, *, activation):
    x = x_ref[...].astype(jnp.float32)
    w = w_ref[...].astype(jnp.float32)
    y = jnp.dot(x, w, preferred_element_type=jnp.float32) + b_ref[...].astype(jnp.float32)
    if activation == "relu":
        y = jnp.maximum(y, 0.0)
    o_ref[...] = y.astype(o_ref.dtype)


def pallas_linear(x, w, b, activation="none", row_tile=512):
    """x: (M, Din), w: (Din, Dout), b: (Dout,) -> (M, Dout). Row-tiled, pipelined."""
    M, Din = x.shape
    Dout = w.shape[1]
    tm = _row_tile(M, row_tile)
    ce = pl.CostEstimate(
        flops=2 * M * Din * Dout,
        transcendentals=0,
        bytes_accessed=4 * (M * Din + Din * Dout + M * Dout))
    return pl.pallas_call(
        functools.partial(_linear_kernel, activation=activation),
        out_shape=jax.ShapeDtypeStruct((M, Dout), x.dtype),
        grid=(pl.cdiv(M, tm),),
        in_specs=[
            pl.BlockSpec((tm, Din), lambda i: (i, 0)),
            pl.BlockSpec((Din, Dout), lambda i: (0, 0)),   # weight resident across row tiles
            pl.BlockSpec((1, Dout), lambda i: (0, 0)),
        ],
        out_specs=pl.BlockSpec((tm, Dout), lambda i: (i, 0)),
        compiler_params=_PARALLEL_1D,
        cost_estimate=ce,
    )(x, w, b.reshape(1, Dout))


def _matmul_add_ln_kernel(x_ref, r_ref, w_ref, b_ref, g_ref, be_ref, o_ref, *, eps):
    """LN(residual + x @ W + b) fused into the matmul epilogue."""
    x = x_ref[...].astype(jnp.float32)
    w = w_ref[...].astype(jnp.float32)
    y = jnp.dot(x, w, preferred_element_type=jnp.float32) + b_ref[...].astype(jnp.float32)
    z = r_ref[...].astype(jnp.float32) + y
    mean = jnp.mean(z, axis=-1, keepdims=True)
    var = jnp.mean((z - mean) ** 2, axis=-1, keepdims=True)
    zn = (z - mean) * jax.lax.rsqrt(var + eps)
    o_ref[...] = (zn * g_ref[...].astype(jnp.float32)
                  + be_ref[...].astype(jnp.float32)).astype(o_ref.dtype)


def pallas_matmul_add_ln(x, residual, w, b, gamma, beta, eps=1e-5, row_tile=512):
    M, Din = x.shape
    Dout = w.shape[1]
    tm = _row_tile(M, row_tile)
    ce = pl.CostEstimate(
        flops=2 * M * Din * Dout + 10 * M * Dout,
        transcendentals=0,
        bytes_accessed=4 * (M * Din + M * Dout + Din * Dout + M * Dout))
    return pl.pallas_call(
        functools.partial(_matmul_add_ln_kernel, eps=eps),
        out_shape=jax.ShapeDtypeStruct((M, Dout), x.dtype),
        grid=(pl.cdiv(M, tm),),
        in_specs=[
            pl.BlockSpec((tm, Din), lambda i: (i, 0)),
            pl.BlockSpec((tm, Dout), lambda i: (i, 0)),
            pl.BlockSpec((Din, Dout), lambda i: (0, 0)),
            pl.BlockSpec((1, Dout), lambda i: (0, 0)),
            pl.BlockSpec((1, Dout), lambda i: (0, 0)),
            pl.BlockSpec((1, Dout), lambda i: (0, 0)),
        ],
        out_specs=pl.BlockSpec((tm, Dout), lambda i: (i, 0)),
        compiler_params=_PARALLEL_1D,
        cost_estimate=ce,
    )(x, residual, w, b.reshape(1, Dout), gamma.reshape(1, Dout), beta.reshape(1, Dout))


def _ffn_add_ln_kernel(x_ref, w1_ref, b1_ref, w2_ref, b2_ref, g_ref, be_ref, o_ref, *, eps):
    """LN(x + linear2(relu(linear1(x)))) — hidden activation stays on-chip."""
    x = x_ref[...].astype(jnp.float32)
    h = jnp.dot(x, w1_ref[...].astype(jnp.float32), preferred_element_type=jnp.float32)
    h = jnp.maximum(h + b1_ref[...].astype(jnp.float32), 0.0)
    y = jnp.dot(h, w2_ref[...].astype(jnp.float32), preferred_element_type=jnp.float32)
    z = x + y + b2_ref[...].astype(jnp.float32)
    mean = jnp.mean(z, axis=-1, keepdims=True)
    var = jnp.mean((z - mean) ** 2, axis=-1, keepdims=True)
    zn = (z - mean) * jax.lax.rsqrt(var + eps)
    o_ref[...] = (zn * g_ref[...].astype(jnp.float32)
                  + be_ref[...].astype(jnp.float32)).astype(o_ref.dtype)


def pallas_ffn_add_ln(x, w1, b1, w2, b2, gamma, beta, eps=1e-5, row_tile=512):
    M, D = x.shape
    F = w1.shape[1]
    tm = _row_tile(M, row_tile)
    ce = pl.CostEstimate(
        flops=4 * M * D * F + 10 * M * D,
        transcendentals=0,
        bytes_accessed=4 * (2 * M * D + 2 * D * F))
    return pl.pallas_call(
        functools.partial(_ffn_add_ln_kernel, eps=eps),
        out_shape=jax.ShapeDtypeStruct((M, D), x.dtype),
        grid=(pl.cdiv(M, tm),),
        in_specs=[
            pl.BlockSpec((tm, D), lambda i: (i, 0)),
            pl.BlockSpec((D, F), lambda i: (0, 0)),
            pl.BlockSpec((1, F), lambda i: (0, 0)),
            pl.BlockSpec((F, D), lambda i: (0, 0)),
            pl.BlockSpec((1, D), lambda i: (0, 0)),
            pl.BlockSpec((1, D), lambda i: (0, 0)),
            pl.BlockSpec((1, D), lambda i: (0, 0)),
        ],
        out_specs=pl.BlockSpec((tm, D), lambda i: (i, 0)),
        compiler_params=_PARALLEL_1D,
        cost_estimate=ce,
    )(x, w1, b1.reshape(1, F), w2, b2.reshape(1, D), gamma.reshape(1, D), beta.reshape(1, D))


def _deform_attn_kernel(val_ref, oa_ref, ref_ref, o_ref, *,
                        temporal_lens, level_starts, n_heads, d_head, n_points,
                        contiguous_levels):
    """Multi-scale 1D deformable attention core for one (batch, query-tile) block.

    val_ref : (1, T, H*Dh)         flattened multi-level value features (resident across q tiles)
    oa_ref  : (1, tq, 2*H*nL*nP)   fused projection output: [sampling offsets | attn logits]
    ref_ref : (1, tq, nL)          per-level normalized reference points in [0, 1]
    o_ref   : (1, tq, H*Dh)

    The sampling location is built in-register:
        loc = ref_l + off / T_l ; grid_sample(align_corners=False) coord x = loc*T_l - 0.5
        =>  x = ref_l*T_l + off - 0.5
    """
    n_levels = len(temporal_lens)
    lp = n_levels * n_points
    hlp = n_heads * lp

    val = val_ref[0].astype(jnp.float32)      # (T, H*Dh)
    oa = oa_ref[0].astype(jnp.float32)        # (tq, 2*HLP)
    ref = ref_ref[0].astype(jnp.float32)      # (tq, nL)
    Lq = oa.shape[0]

    offs = oa[:, :hlp]                        # (tq, HLP)
    logits = oa[:, hlp:2 * hlp]               # (tq, HLP)

    # per-head softmax over (n_levels * n_points) logits
    attn_heads = []
    for h in range(n_heads):
        lg = logits[:, h * lp:(h + 1) * lp]
        m = jnp.max(lg, axis=-1, keepdims=True)
        e = jnp.exp(lg - m)
        attn_heads.append(e / jnp.sum(e, axis=-1, keepdims=True))   # (tq, nL*nP)

    # sampling-weight slabs per (head, level); level-dependent iota and reference base are
    # hoisted out of the head loop, and the (Lq, nP, T_l) temporary is avoided by accumulating
    # over the nP points.
    wslabs = [[None] * n_levels for _ in range(n_heads)]
    for l in range(n_levels):
        T_l = temporal_lens[l]
        t_idx = jax.lax.broadcasted_iota(jnp.float32, (Lq, T_l), 1)
        base = ref[:, l:l + 1] * float(T_l) - 0.5                   # (tq, 1)
        for h in range(n_heads):
            col0 = (h * n_levels + l) * n_points
            x = base + offs[:, col0:col0 + n_points]                # (tq, nP) sample coord
            a = attn_heads[h][:, l * n_points:(l + 1) * n_points]   # (tq, nP)
            wsum = jnp.zeros((Lq, T_l), jnp.float32)
            for p in range(n_points):
                # linear interpolation with zero padding == relu(1 - |x - t|)
                wp = jnp.maximum(0.0, 1.0 - jnp.abs(x[:, p:p + 1] - t_idx))  # (tq, T_l)
                wsum = wsum + a[:, p:p + 1] * wp
            wslabs[h][l] = wsum

    # one full-width (tq, T) x (T, Dh) MXU matmul per head
    def _head_out(h):
        v_h = val[:, h * d_head:(h + 1) * d_head]                   # (T, Dh)
        if contiguous_levels:
            w_h = wslabs[h][0] if n_levels == 1 else jnp.concatenate(wslabs[h], axis=-1)
            return jnp.dot(w_h, v_h, preferred_element_type=jnp.float32)
        out_h = jnp.zeros((Lq, d_head), jnp.float32)
        for l in range(n_levels):
            s_l, T_l = level_starts[l], temporal_lens[l]
            out_h = out_h + jnp.dot(wslabs[h][l], val[s_l:s_l + T_l, h * d_head:(h + 1) * d_head],
                                    preferred_element_type=jnp.float32)
        return out_h

    if d_head % 128 == 0:
        # lane-aligned: stream each head out as soon as it is done (frees accumulators)
        for h in range(n_heads):
            o_ref[0, :, h * d_head:(h + 1) * d_head] = _head_out(h).astype(o_ref.dtype)
    else:
        head_outs = [_head_out(h) for h in range(n_heads)]
        o_ref[0] = jnp.concatenate(head_outs, axis=-1).astype(o_ref.dtype)


def pallas_deform_attn(value, oa, ref_points, temporal_lens, level_starts,
                       n_heads, d_head, n_points, q_tile=256):
    """value: (B, T, H*Dh); oa: (B, Lq, 2*H*nL*nP); ref_points: (B, Lq, nL) -> (B, Lq, H*Dh)."""
    B, T, HD = value.shape
    _, Lq, X2 = oa.shape
    temporal_lens = tuple(int(t) for t in temporal_lens)
    level_starts = tuple(int(s) for s in level_starts)
    nL = len(temporal_lens)

    # are the levels laid out contiguously (standard [0, t1, t1+t2, ...] start index)?
    cum, contiguous = 0, True
    for t_l, s_l in zip(temporal_lens, level_starts):
        if s_l != cum:
            contiguous = False
        cum += t_l
    contiguous = contiguous and (cum == T)

    tq = _row_tile(Lq, q_tile)
    kernel = functools.partial(
        _deform_attn_kernel,
        temporal_lens=temporal_lens, level_starts=level_starts,
        n_heads=n_heads, d_head=d_head, n_points=n_points,
        contiguous_levels=contiguous)
    ce = pl.CostEstimate(
        flops=2 * B * Lq * T * HD + 4 * B * Lq * n_heads * nL * n_points * (T // max(nL, 1)),
        transcendentals=B * Lq * n_heads * nL * n_points,
        bytes_accessed=4 * (B * T * HD + B * Lq * X2 + B * Lq * nL + B * Lq * HD))
    return pl.pallas_call(
        kernel,
        out_shape=jax.ShapeDtypeStruct((B, Lq, HD), value.dtype),
        grid=(B, pl.cdiv(Lq, tq)),
        in_specs=[
            pl.BlockSpec((1, T, HD), lambda b, q: (b, 0, 0)),   # value resident across q tiles
            pl.BlockSpec((1, tq, X2), lambda b, q: (b, q, 0)),
            pl.BlockSpec((1, tq, nL), lambda b, q: (b, q, 0)),
        ],
        out_specs=pl.BlockSpec((1, tq, HD), lambda b, q: (b, q, 0)),
        compiler_params=_PARALLEL_2D,
        cost_estimate=ce,
    )(value, oa, ref_points)


# --------------------------------------------------------------------------------------
# Encoder (glue in plain JAX, compute in the kernels above)
# --------------------------------------------------------------------------------------

def encoder_layer_forward(p, src, pos, reference_points, temporal_lens, level_starts,
                          cfg, padding_mask=None):
    B, T, D = src.shape
    H, nL, nP = cfg["n_heads"], cfg["n_levels"], cfg["n_points"]
    Dh = D // H
    HLP = H * nL * nP

    q = src if pos is None else src + pos
    q2 = q.reshape(B * T, D)
    src2 = src.reshape(B * T, D)

    # --- deformable self-attention ---
    # fused sampling-offset + attention-weight projection (both consume q2);
    # split/location math happens inside the deformable-attention kernel.
    oa = pallas_linear(q2, p["W_oa"], p["b_oa"]).reshape(B, T, 2 * HLP)

    value = pallas_linear(src2, p["W_val"], p["b_val"]).reshape(B, T, D)
    if padding_mask is not None:
        value = jnp.where(padding_mask[..., None], 0.0, value)

    ref = reference_points[..., 0]                                  # (B, T, nL)

    attn = pallas_deform_attn(value, oa, ref, temporal_lens, level_starts,
                              n_heads=H, d_head=Dh, n_points=nP)    # (B, T, D)

    # output projection + residual + norm1 fused (dropout == identity in eval)
    x1 = pallas_matmul_add_ln(attn.reshape(B * T, D), src2,
                              p["W_out"], p["b_out"], p["g1"], p["be1"])

    # --- FFN + residual + norm2 fused ---
    x2 = pallas_ffn_add_ln(x1, p["W1"], p["b1"], p["W2"], p["b2"], p["g2"], p["be2"])
    return x2.reshape(B, T, D)


def deformable_transformer_encoder_forward(layer_params, src, temporal_lens, grids,
                                           feature_durations, level_start_index,
                                           valid_ratios, cfg, pos=None, padding_mask=None):
    """Mirrors DeformableTransformerEncoder.forward (eval mode: droppath is identity)."""
    # reference points (exactly as in the PyTorch forward)
    normalized_grids = grids[:, :, None] / feature_durations[:, None, None]          # (B,T,1)
    reference_points = normalized_grids[..., None] * valid_ratios[:, None, :, None]  # (B,T,nL,1)

    output = src
    for p in layer_params:
        output = encoder_layer_forward(p, output, pos, reference_points,
                                       temporal_lens, level_start_index, cfg,
                                       padding_mask=padding_mask)
    return output


# --------------------------------------------------------------------------------------
# Deterministic parameter construction
# --------------------------------------------------------------------------------------

def init_layer_params(key, d_model, d_ffn, n_heads, n_levels, n_points):
    ks = jax.random.split(key, 12)
    hlp = n_heads * n_levels * n_points
    s = 0.02
    w_offs = s * jax.random.normal(ks[0], (d_model, hlp), jnp.float32)
    b_offs = s * jax.random.normal(ks[1], (hlp,), jnp.float32)
    w_attn = s * jax.random.normal(ks[2], (d_model, hlp), jnp.float32)
    b_attn = jnp.zeros((hlp,), jnp.float32)
    return {
        # fused offsets + attention-weight projection (shared input)
        "W_oa": jnp.concatenate([w_offs, w_attn], axis=1),
        "b_oa": jnp.concatenate([b_offs, b_attn], axis=0),
        "W_val":  s * jax.random.normal(ks[3], (d_model, d_model), jnp.float32),
        "b_val":  jnp.zeros((d_model,), jnp.float32),
        "W_out":  s * jax.random.normal(ks[4], (d_model, d_model), jnp.float32),
        "b_out":  jnp.zeros((d_model,), jnp.float32),
        "g1": jnp.ones((d_model,), jnp.float32),
        "be1": jnp.zeros((d_model,), jnp.float32),
        "W1": s * jax.random.normal(ks[5], (d_model, d_ffn), jnp.float32),
        "b1": jnp.zeros((d_ffn,), jnp.float32),
        "W2": s * jax.random.normal(ks[6], (d_ffn, d_model), jnp.float32),
        "b2": jnp.zeros((d_model,), jnp.float32),
        "g2": jnp.ones((d_model,), jnp.float32),
        "be2": jnp.zeros((d_model,), jnp.float32),
    }


# --------------------------------------------------------------------------------------
# Main
# --------------------------------------------------------------------------------------

if __name__ == "__main__":
    key = jax.random.PRNGKey(0)

    # small, shape-consistent configuration
    B = 2
    temporal_lens = (8, 4)                  # per-level temporal lengths
    n_levels = len(temporal_lens)
    T = sum(temporal_lens)                  # flattened temporal length = 12
    d_model = 32
    n_heads = 4
    n_points = 2
    d_ffn = 64
    num_layers = 2
    level_start_index = (0, 8)

    cfg = dict(n_heads=n_heads, n_levels=n_levels, n_points=n_points)

    k_src, k_pos, k_vr, *k_layers = jax.random.split(key, 3 + num_layers)

    src = jax.random.normal(k_src, (B, T, d_model), jnp.float32)
    pos = 0.02 * jax.random.normal(k_pos, (B, T, d_model), jnp.float32)

    feature_durations = jnp.asarray([64.0, 48.0], jnp.float32)       # (B,)
    # grids: per-level center positions scaled to the clip duration, concatenated over levels
    grids_per_batch = []
    for b in range(B):
        per_lvl = [(jnp.arange(tl, dtype=jnp.float32) + 0.5) * (feature_durations[b] / tl)
                   for tl in temporal_lens]
        grids_per_batch.append(jnp.concatenate(per_lvl, axis=0))
    grids = jnp.stack(grids_per_batch, axis=0)                        # (B, T)

    valid_ratios = 0.7 + 0.3 * jax.random.uniform(k_vr, (B, n_levels), jnp.float32)

    layer_params = [init_layer_params(k, d_model, d_ffn, n_heads, n_levels, n_points)
                    for k in k_layers]

    out = deformable_transformer_encoder_forward(
        layer_params, src, temporal_lens, grids, feature_durations,
        level_start_index, valid_ratios, cfg, pos=pos, padding_mask=None)

    out = jax.block_until_ready(out)
    assert out.shape == (B, T, d_model)
    assert jnp.all(jnp.isfinite(out))
    print("KERNEL_OK")
</pallas_src>

<mosaic_0001>
module attributes {stable_mosaic.version = 11 : i64} {
  func.func @_linear_kernel(%arg0: i32, %arg1: memref<24x32xf32, #tpu.memory_space<vmem>>, %arg2: memref<32x32xf32, #tpu.memory_space<vmem>>, %arg3: memref<1x32xf32, #tpu.memory_space<vmem>>, %arg4: memref<24x32xf32, #tpu.memory_space<vmem>>) attributes {dimension_semantics = [#tpu.dimension_semantics<parallel>], iteration_bounds = array<i64: 1>, scalar_prefetch = 0 : i64, scratch_operands = 0 : i64, tpu.core_type = #tpu.core_type<tc>, window_params = [{transform_indices = @transform_0, window_bounds = array<i64: 24, 32>}, {pipeline_mode = #tpu.pipeline_mode<synchronous>, transform_indices = @transform_1, window_bounds = array<i64: 32, 32>}, {pipeline_mode = #tpu.pipeline_mode<synchronous>, transform_indices = @transform_2, window_bounds = array<i64: 1, 32>}, {transform_indices = @transform_3, window_bounds = array<i64: 24, 32>}]} {
    %c0 = arith.constant 0 : index
    %c0_0 = arith.constant 0 : index
    %0 = vector.load %arg1[%c0, %c0_0] : memref<24x32xf32, #tpu.memory_space<vmem>>, vector<24x32xf32>
    %c0_1 = arith.constant 0 : index
    %c0_2 = arith.constant 0 : index
    %1 = vector.load %arg2[%c0_1, %c0_2] : memref<32x32xf32, #tpu.memory_space<vmem>>, vector<32x32xf32>
    %cst = arith.constant dense<0.000000e+00> : vector<24x32xf32>
    %2 = tpu.matmul %0, %1, %cst {dimension_numbers = #tpu.dot_dimension_numbers<[1], [0], [0], [1], [0, 0, 1, 1], [], []>} : vector<24x32xf32>, vector<32x32xf32>, vector<24x32xf32> -> vector<24x32xf32>
    %c0_3 = arith.constant 0 : index
    %c0_4 = arith.constant 0 : index
    %3 = vector.load %arg3[%c0_3, %c0_4] : memref<1x32xf32, #tpu.memory_space<vmem>>, vector<1x32xf32>
    %4 = vector.broadcast %3 : vector<1x32xf32> to vector<24x32xf32>
    %5 = arith.addf %2, %4 : vector<24x32xf32>
    %c0_5 = arith.constant 0 : index
    %c0_6 = arith.constant 0 : index
    %6 = vector.load %arg4[%c0_5, %c0_6] : memref<24x32xf32, #tpu.memory_space<vmem>>, vector<24x32xf32>
    tpu.vector_store %arg4[%c0_5, %c0_6], %5 {strides = array<i32>} : memref<24x32xf32, #tpu.memory_space<vmem>>, vector<24x32xf32>,
    return
  }
  func.func @transform_0(%arg0: i32) -> (i32, i32) {
    %c0_i32 = arith.constant 0 : i32
    %c0_i32_0 = arith.constant 0 : i32
    return %arg0, %c0_i32 : i32, i32
  }
  func.func @transform_1(%arg0: i32) -> (i32, i32) {
    %c0_i32 = arith.constant 0 : i32
    %c0_i32_0 = arith.constant 0 : i32
    %c0_i32_1 = arith.constant 0 : i32
    return %c0_i32, %c0_i32_0 : i32, i32
  }
  func.func @transform_2(%arg0: i32) -> (i32, i32) {
    %c0_i32 = arith.constant 0 : i32
    %c0_i32_0 = arith.constant 0 : i32
    %c0_i32_1 = arith.constant 0 : i32
    return %c0_i32, %c0_i32_0 : i32, i32
  }
  func.func @transform_3(%arg0: i32) -> (i32, i32) {
    %c0_i32 = arith.constant 0 : i32
    %c0_i32_0 = arith.constant 0 : i32
    return %arg0, %c0_i32 : i32, i32
  }
}

</mosaic_0001>

<llo_original>
// kernel: tpu_custom_call.1
$region0: #{tpu_custom_call.1}
  #allocation0 [shape = 'u32[]', space=smem, size = 0x4, offset = 0x4, fixed_abs, tag = 'smem constant byte address 0x4 - core index']
  #allocation1 [shape = 'u32[144,128]{1,0:T(1,128)}', space=vmem, size = 0x12000, scoped, tag = 'internal scratch']
  %s0 = inlined_call_operand.hbm [shape: f32[24,32], index: 0, kind: input, shape index: {}]
  %s1 = inlined_call_operand.hbm [shape: f32[32,32], index: 1, kind: input, shape index: {}]
  %s2 = inlined_call_operand.vmem [shape: f32[1,32], index: 2, kind: input, shape index: {}]
  %s3 = inlined_call_operand.hbm [shape: f32[24,32], index: 3, kind: output, shape index: {}]
  %s4 = sld [smem:[#allocation0]]
  $region30: #{tpu_custom_call.1} parent=0
    _
  %s6 = ssub.s32 1, %s4
  %s7 = scalar_select 0, %s6, %s4
  $region1: #{tpu_custom_call.1} parent=0
    #allocation2 [shape = 'u8[12288]{0}', space=vmem, size = 0x3000, scoped, tag = 'input window, operand 0, single buffered']
    #allocation3 [shape = 's32[1]{0}', space=sflag, size = 0x4, scoped, tag = 'scoped memory for tpu_custom_call.1']
    #allocation4 [shape = 's32[1]{0}', space=sflag, size = 0x4, scoped, tag = 'scoped memory for tpu_custom_call.1']
    #allocation5 [shape = 'u8[16384]{0}', space=vmem, size = 0x4000, scoped, tag = 'input window, operand 1, single buffered']
    #allocation6 [shape = 's32[1]{0}', space=sflag, size = 0x4, scoped, tag = 'scoped memory for tpu_custom_call.1']
    #allocation7 [shape = 'u8[12288]{0}', space=vmem, size = 0x3000, scoped, tag = 'output window, operand 0, single buffered']
    %8 = vsyncpa [#allocation3], 0
    %9 = vsyncpa [#allocation6], 0
    %10 = vsyncpa [#allocation4], 0
    // Predicated region
    $region2: #{tpu_custom_call.1} parent=1 // pred_check
      _
    $region3: #{tpu_custom_call.1} parent=1 // pred_check_branch
      %12 = sbr.rel (0) target = $region5
    $region4: #{tpu_custom_call.1} parent=1 // pred_region
      %s14 = ssub.s32 384, 384
      %15 = vsyncadd [#allocation3], %s14
      %s16 = sshll.u32 [#allocation2], 4
      %s17 = int_to_ptr.vmem [resolvable:$true] %s16
      %22 = dma.hbm_to_vmem [thread:$0]  %s0, 384, %s17, [#allocation3], 128, 128, 8
    $region5: #{tpu_custom_call.1} parent=1 // pred_fallthru
      _
    // Predicated region
    $region6: #{tpu_custom_call.1} parent=1 // pred_check
      _
    $region7: #{tpu_custom_call.1} parent=1 // pred_check_branch
      %24 = sbr.rel (0) target = $region9
    $region8: #{tpu_custom_call.1} parent=1 // pred_region
      %s26 = ssub.s32 512, 512
      %27 = vsyncadd [#allocation6], %s26
      %s28 = sshll.u32 [#allocation5], 4
      %s29 = int_to_ptr.vmem [resolvable:$true] %s28
      %34 = dma.hbm_to_vmem [thread:$0]  %s1, 512, %s29, [#allocation6], 128, 128, 8
    $region9: #{tpu_custom_call.1} parent=1 // pred_fallthru
      _
    // Predicated region
    $region10: #{tpu_custom_call.1} parent=1 // pred_check
      _
    $region11: #{tpu_custom_call.1} parent=1 // pred_check_branch
      %36 = sbr.rel (0) target = $region13
    $region12: #{tpu_custom_call.1} parent=1 // pred_region
      _
    $region13: #{tpu_custom_call.1} parent=1 // pred_fallthru
      _
    // Predicated region
    $region14: #{tpu_custom_call.1} parent=1 // pred_check
      _
    $region15: #{tpu_custom_call.1} parent=1 // pred_check_branch
      %38 = sbr.rel (0) target = $region17
    $region16: #{tpu_custom_call.1} parent=1 // pred_region
      %39 = dma.done [#allocation3], 384
    $region17: #{tpu_custom_call.1} parent=1 // pred_fallthru
      _
    // Predicated region
    $region18: #{tpu_custom_call.1} parent=1 // pred_check
      _
    $region19: #{tpu_custom_call.1} parent=1 // pred_check_branch
      %41 = sbr.rel (0) target = $region21
    $region20: #{tpu_custom_call.1} parent=1 // pred_region
      %42 = dma.done [#allocation6], 512
    $region21: #{tpu_custom_call.1} parent=1 // pred_fallthru
      _
    %v43 = vld [vmem:[#allocation2] sm:$0xff]
    %v44 = vld [vmem:[#allocation2 + $0x8] sm:$0xff]
    %v45 = vld [vmem:[#allocation2 + $0x10] sm:$0xff]
    %v46 = vld [vmem:[#allocation5] sm:$0xff]
    %v47 = vld [vmem:[#allocation5 + $0x8] sm:$0xff]
    %v48 = vld [vmem:[#allocation5 + $0x10] sm:$0xff]
    %v49 = vld [vmem:[#allocation5 + $0x18] sm:$0xff]
    %v50 = vld [vmem:[%s2] sm:$0x1]
    %v52 = vlaneseq
    %v53 = vshrl.u32 %v52, 7
    %v54 = vsub.s32 0, %v53
    %v55 = vrot.slane %v50, %v54
    %vm57 = vcmask 261120
    %v59 = vsel %vm57, %v43, 0
    %v62 = vsel %vm57, %v44, 0
    %v65 = vsel %vm57, %v45, 0
    %67 = vmatprep.subr.mxu0 0.0
    %68 = vmatpush1.msra.mxu0 0.0
    %69 = vmatprep.subr.mxu0 0.0
    %70 = vmatpush1.msra.mxu0 0.0
    %71 = vmatprep.subr.mxu0 0.0
    %72 = vmatpush1.msra.mxu0 0.0
    %73 = vmatprep.subr.mxu0 0.0
    %74 = vmatpush1.msra.mxu0 0.0
    %75 = vmatprep.subr.mxu0 0.0
    %76 = vmatpush1.msra.mxu0 0.0
    %77 = vmatprep.subr.mxu0 0.0
    %78 = vmatpush1.msra.mxu0 0.0
    %79 = vmatprep.subr.mxu0 0.0
    %80 = vmatpush1.msra.mxu0 0.0
    %81 = vmatprep.subr.mxu0 0.0
    %82 = vmatpush1.msra.mxu0 0.0
    %83 = vmatprep.subr.mxu0 0.0
    %84 = vmatpush1.msra.mxu0 0.0
    %85 = vmatprep.subr.mxu0 0.0
    %86 = vmatpush1.msra.mxu0 0.0
    %87 = vmatprep.subr.mxu0 0.0
    %88 = vmatpush1.msra.mxu0 0.0
    %89 = vmatprep.subr.mxu0 0.0
    %90 = vmatpush1.msra.mxu0 0.0
    %91 = vmatprep.subr.mxu0 0.0
    %92 = vmatpush1.msra.mxu0 %v49
    %93 = vmatprep.subr.mxu0 0.0
    %94 = vmatpush1.msra.mxu0 %v48
    %95 = vmatprep.subr.mxu0 0.0
    %96 = vmatpush1.msra.mxu0 %v47
    %97 = vmatprep.subr.mxu0 0.0
    %98 = vmatpush1.msra.mxu0 %v46
    %99 = vmatprep.subr.mxu0 0.0
    %100 = vmatpush2.msra.mxu0 0.0
    %101 = vmatprep.subr.mxu0 0.0
    %102 = vmatpush2.msra.mxu0 0.0
    %103 = vmatprep.subr.mxu0 0.0
    %104 = vmatpush2.msra.mxu0 0.0
    %105 = vmatprep.subr.mxu0 0.0
    %106 = vmatpush2.msra.mxu0 0.0
    %107 = vmatprep.subr.mxu0 0.0
    %108 = vmatpush2.msra.mxu0 0.0
    %109 = vmatprep.subr.mxu0 0.0
    %110 = vmatpush2.msra.mxu0 0.0
    %111 = vmatprep.subr.mxu0 0.0
    %112 = vmatpush2.msra.mxu0 0.0
    %113 = vmatprep.subr.mxu0 0.0
    %114 = vmatpush2.msra.mxu0 0.0
    %115 = vmatprep.subr.mxu0 0.0
    %116 = vmatpush2.msra.mxu0 0.0
    %117 = vmatprep.subr.mxu0 0.0
    %118 = vmatpush2.msra.mxu0 0.0
    %119 = vmatprep.subr.mxu0 0.0
    %120 = vmatpush2.msra.mxu0 0.0
    %121 = vmatprep.subr.mxu0 0.0
    %122 = vmatpush2.msra.mxu0 0.0
    %123 = vmatprep.subr.mxu0 0.0
    %124 = vmatpush2.msra.mxu0 0.0
    %125 = vmatprep.subr.mxu0 0.0
    %126 = vmatpush2.msra.mxu0 0.0
    %127 = vmatprep.subr.mxu0 0.0
    %128 = vmatpush2.msra.mxu0 0.0
    %129 = vmatprep.subr.mxu0 0.0
    %130 = vmatpush2.msra.mxu0 0.0
    %131 = vmatprep.mubr.f32.mxu0 0.0
    %132 = vmatmul.mubr.f32.gmra.mxu0 %v59
    %v133 = vpop.f32.mrf.mxu0
    %v134 = vadd.f32 %v55, %v133
    %v135 = vpop.f32.mrf.mxu0
    %136 = vmatprep.mubr.f32.mxu0 0.0
    %137 = vmatmul.mubr.f32.gmra.mxu0 %v62
    %v138 = vpop.f32.mrf.mxu0
    %v139 = vadd.f32 %v55, %v138
    %v140 = vpop.f32.mrf.mxu0
    %141 = vmatprep.mubr.f32.mxu0 0.0
    %142 = vmatmul.mubr.f32.gmra.mxu0 %v65
    %v143 = vpop.f32.mrf.mxu0
    %v144 = vadd.f32 %v55, %v143
    %v145 = vpop.f32.mrf.mxu0
    %146 = vdwg.mxu0
    %147 = vst.msk [vmem:[#allocation7] sm:$0xff] %vm57, %v134
    %148 = vst.msk [vmem:[#allocation7 + $0x8] sm:$0xff] %vm57, %v139
    %149 = vst.msk [vmem:[#allocation7 + $0x10] sm:$0xff] %vm57, %v144
    // Predicated region
    $region22: #{tpu_custom_call.1} parent=1 // pred_check
      _
    $region23: #{tpu_custom_call.1} parent=1 // pred_check_branch
      %151 = sbr.rel (0) target = $region25
    $region24: #{tpu_custom_call.1} parent=1 // pred_region
      %s153 = ssub.s32 384, 384
      %154 = vsyncadd [#allocation4], %s153
      %s155 = sshll.u32 [#allocation7], 4
      %s156 = int_to_ptr.vmem [resolvable:$true] %s155
      %161 = dma.vmem_to_hbm [thread:$0]  %s156, 384, %s3, [#allocation4], 128, 128, 8
    $region25: #{tpu_custom_call.1} parent=1 // pred_fallthru
      _
    // Predicated region
    $region26: #{tpu_custom_call.1} parent=1 // pred_check
      _
    $region27: #{tpu_custom_call.1} parent=1 // pred_check_branch
      %163 = sbr.rel (0) target = $region29
    $region28: #{tpu_custom_call.1} parent=1 // pred_region
      %164 = dma.done [#allocation4], 384
    $region29: #{tpu_custom_call.1} parent=1 // pred_fallthru
      _
    %165 = vsyncpa [#allocation3], 1
    %166 = vsyncpa [#allocation6], 1
    %167 = vsyncpa [#allocation4], 1

</llo_original>
